<compile_context>
chip_gen: v7x
topology: tpu7x:2x2x1
jax: 0.10.0
libtpu: 0.0.40
codegen_flags: <defaults>
</compile_context>

<pallas_src>
import functools

import jax
import jax.numpy as jnp
import numpy as np
from jax.experimental import pallas as pl
from jax.experimental.pallas import tpu as pltpu

BN_EPS = 1e-3      # nn.BatchNorm1d(..., eps=0.001)
LANE = 128
SUBLANE = 8


def _round_up(x, m):
    return ((x + m - 1) // m) * m


# -----------------------------------------------------------------------------
# Kernel factory: fused stack of [Linear(+BN folded) -> ReLU] layers.
# grid = (num_batch_tiles,); weights are VMEM-resident; layer loop unrolled.
# -----------------------------------------------------------------------------
def _make_kernel(n_layers, has_cov, inject_covariates, compute_dtype):
    inject = bool(has_cov and inject_covariates and n_layers > 1)

    def kernel(*refs):
        it = iter(refs)
        x_ref = next(it)                                  # (tb, in_pad)  bf16
        cov_ref = next(it) if has_cov else None           # (tb, c_pad)   bf16
        w0m_ref = next(it)                                # (in_pad, h_pad) bf16
        w0c_ref = next(it) if has_cov else None           # (c_pad, h_pad)  bf16
        wh_ref = next(it) if n_layers > 1 else None       # (L-1, h_pad, h_pad)
        whc_ref = next(it) if inject else None            # (L-1, c_pad, h_pad)
        b_ref = next(it)                                  # (L, 1, h_pad) f32
        o_ref = next(it)                                  # (tb, h_pad)   f32

        cov = cov_ref[...] if has_cov else None

        # ---- layer 0: x_main @ W0_main (+ x_cov @ W0_cov) + b0, ReLU -------
        y = jnp.dot(x_ref[...], w0m_ref[...],
                    preferred_element_type=jnp.float32)
        if has_cov:
            y = y + jnp.dot(cov, w0c_ref[...],
                            preferred_element_type=jnp.float32)
        y = y + b_ref[0]
        act = jnp.maximum(y, 0.0)

        # ---- layers 1 .. n_layers-1 (static unroll) -------------------------
        for i in range(1, n_layers):
            a = act.astype(compute_dtype)
            y = jnp.dot(a, wh_ref[i - 1],
                        preferred_element_type=jnp.float32)
            if inject:
                y = y + jnp.dot(cov, whc_ref[i - 1],
                                preferred_element_type=jnp.float32)
            y = y + b_ref[i]
            act = jnp.maximum(y, 0.0)

        o_ref[...] = act.astype(o_ref.dtype)

    return kernel


# -----------------------------------------------------------------------------
# Host-side parameter prep: fold BN into (W, b), split covariate columns,
# zero-pad to lane-dense per-layer widths, cast weights to bf16.
# -----------------------------------------------------------------------------
def _fold_and_pad_params(layer_params, *, n_in, n_covariates,
                         inject_covariates, in_pad, h_pad, c_pad,
                         weight_dtype):
    n_layers = len(layer_params)
    has_cov = n_covariates > 0

    def fold(p):
        w = jnp.asarray(p["w"], jnp.float32)                  # (d_out, d_in_tot)
        scale = jnp.asarray(p["gamma"], jnp.float32) * jax.lax.rsqrt(
            jnp.asarray(p["running_var"], jnp.float32) + BN_EPS)
        w_eff = w.T * scale[None, :]                          # (d_in_tot, d_out)
        b_eff = (jnp.asarray(p["b"], jnp.float32)
                 - jnp.asarray(p["running_mean"], jnp.float32)) * scale \
                + jnp.asarray(p["beta"], jnp.float32)
        return w_eff, b_eff

    # layer 0 (always sees covariates)
    w_eff0, b_eff0 = fold(layer_params[0])
    d_out0 = w_eff0.shape[1]
    w0m = jnp.zeros((in_pad, h_pad), jnp.float32)
    w0m = w0m.at[:n_in, :d_out0].set(w_eff0[:n_in])
    w0c = None
    if has_cov:
        w0c = jnp.zeros((c_pad, h_pad), jnp.float32)
        w0c = w0c.at[:n_covariates, :d_out0].set(w_eff0[n_in:n_in + n_covariates])

    biases = [jnp.zeros((1, h_pad), jnp.float32).at[0, :d_out0].set(b_eff0)]
    whs, whcs = [], []
    for i in range(1, n_layers):
        w_eff, b_eff = fold(layer_params[i])
        d_in_tot, d_out = w_eff.shape
        d_in_main = d_in_tot - (n_covariates if inject_covariates else 0)
        wh = jnp.zeros((h_pad, h_pad), jnp.float32)
        wh = wh.at[:d_in_main, :d_out].set(w_eff[:d_in_main])
        whs.append(wh)
        if inject_covariates and has_cov:
            whc = jnp.zeros((c_pad, h_pad), jnp.float32)
            whc = whc.at[:n_covariates, :d_out].set(w_eff[d_in_main:])
            whcs.append(whc)
        biases.append(jnp.zeros((1, h_pad), jnp.float32).at[0, :d_out].set(b_eff))

    cast = lambda a: a.astype(weight_dtype)
    w0m = cast(w0m)
    w0c = cast(w0c) if w0c is not None else None
    wh_stack = cast(jnp.stack(whs)) if whs else None
    whc_stack = cast(jnp.stack(whcs)) if whcs else None
    bias_stack = jnp.stack(biases)                           # (L, 1, h_pad) f32
    return w0m, w0c, wh_stack, whc_stack, bias_stack


# -----------------------------------------------------------------------------
# Public forward: SequentialInject.forward + FullyConnectedLayers (eval mode)
# -----------------------------------------------------------------------------
def fully_connected_forward(x, layer_params, *, n_in, n_covariates,
                            inject_covariates=True, block_b=256,
                            weight_dtype=jnp.bfloat16):
    x = jnp.asarray(x)
    B = x.shape[0]
    n_layers = len(layer_params)
    has_cov = n_covariates > 0
    inject = bool(has_cov and inject_covariates and n_layers > 1)

    dims = [n_in] + [int(p["w"].shape[0]) for p in layer_params]
    n_out = dims[-1]

    # Per-layer lane-dense padded widths (multiples of 128).
    in_pad = _round_up(max(n_in, 1), LANE)
    h_pad = _round_up(max(dims[1:]), LANE)
    c_pad = _round_up(n_covariates, LANE) if has_cov else 0

    w0m, w0c, wh, whc, bias = _fold_and_pad_params(
        layer_params, n_in=n_in, n_covariates=n_covariates,
        inject_covariates=inject_covariates, in_pad=in_pad, h_pad=h_pad,
        c_pad=c_pad, weight_dtype=weight_dtype)

    dt_bytes = jnp.dtype(weight_dtype).itemsize

    def vmem_estimate(tb):
        est = 2 * tb * in_pad * dt_bytes                       # x (double buffered)
        if has_cov:
            est += 2 * tb * c_pad * dt_bytes
        est += 2 * tb * h_pad * 4                              # output tile
        w_bytes = in_pad * h_pad * dt_bytes                    # resident weights
        if has_cov:
            w_bytes += c_pad * h_pad * dt_bytes
        if n_layers > 1:
            w_bytes += (n_layers - 1) * h_pad * h_pad * dt_bytes
        if inject:
            w_bytes += (n_layers - 1) * c_pad * h_pad * dt_bytes
        w_bytes += n_layers * h_pad * 4                        # biases
        est += 2 * w_bytes                                     # conservative 2x
        est += 4 * tb * h_pad * 4                              # f32 temporaries
        return est

    # Batch tile: large, multiple of 8, shrinks if the footprint would not fit
    # the conservative (v7x-safe) VMEM budget.
    tb = min(_round_up(block_b, SUBLANE), _round_up(B, SUBLANE))
    VMEM_BUDGET = 40 * 1024 * 1024
    while tb > SUBLANE and vmem_estimate(tb) > VMEM_BUDGET:
        tb = _round_up(tb // 2, SUBLANE)
    b_pad = _round_up(B, tb)

    # Build operands / specs (covariate path only when live).
    x_main = jnp.zeros((b_pad, in_pad), weight_dtype)
    x_main = x_main.at[:B, :n_in].set(x[:, :n_in].astype(weight_dtype))
    ops = [x_main]
    in_specs = [pl.BlockSpec((tb, in_pad), lambda b: (b, 0))]

    if has_cov:
        x_cov = jnp.zeros((b_pad, c_pad), weight_dtype)
        x_cov = x_cov.at[:B, :n_covariates].set(
            x[:, n_in:n_in + n_covariates].astype(weight_dtype))
        ops.append(x_cov)
        in_specs.append(pl.BlockSpec((tb, c_pad), lambda b: (b, 0)))

    ops.append(w0m)
    in_specs.append(pl.BlockSpec((in_pad, h_pad), lambda b: (0, 0)))
    if has_cov:
        ops.append(w0c)
        in_specs.append(pl.BlockSpec((c_pad, h_pad), lambda b: (0, 0)))
    if n_layers > 1:
        ops.append(wh)
        in_specs.append(
            pl.BlockSpec((n_layers - 1, h_pad, h_pad), lambda b: (0, 0, 0)))
    if inject:
        ops.append(whc)
        in_specs.append(
            pl.BlockSpec((n_layers - 1, c_pad, h_pad), lambda b: (0, 0, 0)))
    ops.append(bias)
    in_specs.append(pl.BlockSpec((n_layers, 1, h_pad), lambda b: (0, 0, 0)))

    kernel = _make_kernel(n_layers, has_cov, inject_covariates, weight_dtype)

    vmem_limit = int(min(max(32 * 1024 * 1024, vmem_estimate(tb) * 3 // 2),
                         48 * 1024 * 1024))

    out = pl.pallas_call(
        kernel,
        out_shape=jax.ShapeDtypeStruct((b_pad, h_pad), jnp.float32),
        grid=(b_pad // tb,),
        in_specs=in_specs,
        out_specs=pl.BlockSpec((tb, h_pad), lambda b: (b, 0)),
        compiler_params=pltpu.CompilerParams(
            dimension_semantics=("parallel",),
            vmem_limit_bytes=vmem_limit),
    )(*ops)

    return out[:B, :n_out]


# -----------------------------------------------------------------------------
# Pure-JAX reference (unfolded BN, f32) for verification.
# -----------------------------------------------------------------------------
def _reference_forward(x, layer_params, *, n_in, n_covariates,
                       inject_covariates=True):
    x = jnp.asarray(x, jnp.float32)
    x_main = x[:, :n_in]
    x_cov = x[:, n_in:n_in + n_covariates]
    for i, p in enumerate(layer_params):
        use_cov = (i == 0 or inject_covariates) and n_covariates > 0
        inp = jnp.concatenate([x_main, x_cov], axis=1) if use_cov else x_main
        y = inp @ p["w"].T + p["b"]
        y = (y - p["running_mean"]) / jnp.sqrt(p["running_var"] + BN_EPS)
        y = y * p["gamma"] + p["beta"]
        x_main = jnp.maximum(y, 0.0)     # Dropout in eval mode == identity
    return x_main


def init_params(key, *, n_in, n_out, n_covariates, n_layers=2, n_hidden=128,
                inject_covariates=True):
    """Deterministic synthetic parameters with the same shapes as __init__."""
    layers_dim = [n_in] + (n_layers - 1) * [n_hidden] + [n_out]
    params = []
    for i, (d_in, d_out) in enumerate(zip(layers_dim[:-1], layers_dim[1:])):
        if i == 0 or inject_covariates:
            d_in += n_covariates
        key, kw, kb, kg, kbe, km, kv = jax.random.split(key, 7)
        bound = 1.0 / np.sqrt(d_in)
        params.append(dict(
            w=jax.random.uniform(kw, (d_out, d_in), jnp.float32, -bound, bound),
            b=jax.random.uniform(kb, (d_out,), jnp.float32, -bound, bound),
            gamma=1.0 + 0.1 * jax.random.normal(kg, (d_out,), jnp.float32),
            beta=0.1 * jax.random.normal(kbe, (d_out,), jnp.float32),
            running_mean=0.1 * jax.random.normal(km, (d_out,), jnp.float32),
            running_var=jax.random.uniform(kv, (d_out,), jnp.float32, 0.5, 1.5),
        ))
    return params


def _run_case(key, *, batch, n_in, n_cov, n_layers, n_hidden, n_out, inject):
    key, kx = jax.random.split(key)
    x = jax.random.normal(kx, (batch, n_in + n_cov), jnp.float32)
    params = init_params(key, n_in=n_in, n_out=n_out, n_covariates=n_cov,
                         n_layers=n_layers, n_hidden=n_hidden,
                         inject_covariates=inject)
    out = jax.block_until_ready(
        fully_connected_forward(x, params, n_in=n_in, n_covariates=n_cov,
                                inject_covariates=inject))
    ref = _reference_forward(x, params, n_in=n_in, n_covariates=n_cov,
                             inject_covariates=inject)
    # bf16 weights / activations with f32 accumulation -> loosened tolerance.
    np.testing.assert_allclose(np.asarray(out), np.asarray(ref),
                               rtol=3e-2, atol=3e-2)
    assert out.shape == (batch, n_out)


if __name__ == "__main__":
    key = jax.random.PRNGKey(0)

    # 1) covariates injected into every layer; batch not a multiple of 8.
    _run_case(key, batch=10, n_in=16, n_cov=4, n_layers=2, n_hidden=32,
              n_out=12, inject=True)

    # 2) no covariates at all, deeper stack (exercises the no-cov kernel
    #    variant and the resident hidden-weight stack).
    _run_case(jax.random.PRNGKey(1), batch=9, n_in=20, n_cov=0, n_layers=3,
              n_hidden=24, n_out=8, inject=True)

    # 3) covariates only at layer 0 (inject_covariates=False variant).
    _run_case(jax.random.PRNGKey(2), batch=5, n_in=16, n_cov=4, n_layers=2,
              n_hidden=32, n_out=12, inject=False)

    print("KERNEL_OK")
</pallas_src>

<mosaic_0001>
module attributes {stable_mosaic.version = 11 : i64} {
  func.func @kernel(%arg0: i32, %arg1: memref<16x128xbf16, #tpu.memory_space<vmem>>, %arg2: memref<16x128xbf16, #tpu.memory_space<vmem>>, %arg3: memref<128x128xbf16, #tpu.memory_space<vmem>>, %arg4: memref<128x128xbf16, #tpu.memory_space<vmem>>, %arg5: memref<1x128x128xbf16, #tpu.memory_space<vmem>>, %arg6: memref<1x128x128xbf16, #tpu.memory_space<vmem>>, %arg7: memref<2x1x128xf32, #tpu.memory_space<vmem>>, %arg8: memref<16x128xf32, #tpu.memory_space<vmem>>) attributes {dimension_semantics = [#tpu.dimension_semantics<parallel>], iteration_bounds = array<i64: 1>, scalar_prefetch = 0 : i64, scratch_operands = 0 : i64, tpu.core_type = #tpu.core_type<tc>, window_params = [{transform_indices = @transform_0, window_bounds = array<i64: 16, 128>}, {transform_indices = @transform_1, window_bounds = array<i64: 16, 128>}, {pipeline_mode = #tpu.pipeline_mode<synchronous>, transform_indices = @transform_2, window_bounds = array<i64: 128, 128>}, {pipeline_mode = #tpu.pipeline_mode<synchronous>, transform_indices = @transform_3, window_bounds = array<i64: 128, 128>}, {pipeline_mode = #tpu.pipeline_mode<synchronous>, transform_indices = @transform_4, window_bounds = array<i64: 1, 128, 128>}, {pipeline_mode = #tpu.pipeline_mode<synchronous>, transform_indices = @transform_5, window_bounds = array<i64: 1, 128, 128>}, {pipeline_mode = #tpu.pipeline_mode<synchronous>, transform_indices = @transform_6, window_bounds = array<i64: 2, 1, 128>}, {transform_indices = @transform_7, window_bounds = array<i64: 16, 128>}]} {
    %c0 = arith.constant 0 : index
    %c0_0 = arith.constant 0 : index
    %0 = vector.load %arg2[%c0, %c0_0] : memref<16x128xbf16, #tpu.memory_space<vmem>>, vector<16x128xbf16>
    %c0_1 = arith.constant 0 : index
    %c0_2 = arith.constant 0 : index
    %1 = vector.load %arg1[%c0_1, %c0_2] : memref<16x128xbf16, #tpu.memory_space<vmem>>, vector<16x128xbf16>
    %c0_3 = arith.constant 0 : index
    %c0_4 = arith.constant 0 : index
    %2 = vector.load %arg3[%c0_3, %c0_4] : memref<128x128xbf16, #tpu.memory_space<vmem>>, vector<128x128xbf16>
    %cst = arith.constant dense<0.000000e+00> : vector<16x128xf32>
    %3 = tpu.matmul %1, %2, %cst {dimension_numbers = #tpu.dot_dimension_numbers<[1], [0], [0], [1], [0, 0, 1, 1], [], []>} : vector<16x128xbf16>, vector<128x128xbf16>, vector<16x128xf32> -> vector<16x128xf32>
    %c0_5 = arith.constant 0 : index
    %c0_6 = arith.constant 0 : index
    %4 = vector.load %arg4[%c0_5, %c0_6] : memref<128x128xbf16, #tpu.memory_space<vmem>>, vector<128x128xbf16>
    %cst_7 = arith.constant dense<0.000000e+00> : vector<16x128xf32>
    %5 = tpu.matmul %0, %4, %cst_7 {dimension_numbers = #tpu.dot_dimension_numbers<[1], [0], [0], [1], [0, 0, 1, 1], [], []>} : vector<16x128xbf16>, vector<128x128xbf16>, vector<16x128xf32> -> vector<16x128xf32>
    %6 = arith.addf %3, %5 : vector<16x128xf32>
    %c0_8 = arith.constant 0 : index
    %c0_9 = arith.constant 0 : index
    %c0_10 = arith.constant 0 : index
    %7 = vector.load %arg7[%c0_8, %c0_9, %c0_10] : memref<2x1x128xf32, #tpu.memory_space<vmem>>, vector<1x1x128xf32>
    %8 = vector.shape_cast %7 : vector<1x1x128xf32> to vector<1x128xf32>
    %9 = vector.broadcast %8 : vector<1x128xf32> to vector<16x128xf32>
    %10 = arith.addf %6, %9 : vector<16x128xf32>
    %cst_11 = arith.constant 0.000000e+00 : f32
    %11 = vector.broadcast %cst_11 : f32 to vector<16x128xf32>
    %12 = arith.maximumf %10, %11 : vector<16x128xf32>
    %13 = arith.truncf %12 : vector<16x128xf32> to vector<16x128xbf16>
    %c0_12 = arith.constant 0 : index
    %c0_13 = arith.constant 0 : index
    %c0_14 = arith.constant 0 : index
    %14 = vector.load %arg5[%c0_12, %c0_13, %c0_14] : memref<1x128x128xbf16, #tpu.memory_space<vmem>>, vector<1x128x128xbf16>
    %15 = vector.shape_cast %14 : vector<1x128x128xbf16> to vector<128x128xbf16>
    %cst_15 = arith.constant dense<0.000000e+00> : vector<16x128xf32>
    %16 = tpu.matmul %13, %15, %cst_15 {dimension_numbers = #tpu.dot_dimension_numbers<[1], [0], [0], [1], [0, 0, 1, 1], [], []>} : vector<16x128xbf16>, vector<128x128xbf16>, vector<16x128xf32> -> vector<16x128xf32>
    %c0_16 = arith.constant 0 : index
    %c0_17 = arith.constant 0 : index
    %c0_18 = arith.constant 0 : index
    %17 = vector.load %arg6[%c0_16, %c0_17, %c0_18] : memref<1x128x128xbf16, #tpu.memory_space<vmem>>, vector<1x128x128xbf16>
    %18 = vector.shape_cast %17 : vector<1x128x128xbf16> to vector<128x128xbf16>
    %cst_19 = arith.constant dense<0.000000e+00> : vector<16x128xf32>
    %19 = tpu.matmul %0, %18, %cst_19 {dimension_numbers = #tpu.dot_dimension_numbers<[1], [0], [0], [1], [0, 0, 1, 1], [], []>} : vector<16x128xbf16>, vector<128x128xbf16>, vector<16x128xf32> -> vector<16x128xf32>
    %20 = arith.addf %16, %19 : vector<16x128xf32>
    %c1 = arith.constant 1 : index
    %c0_20 = arith.constant 0 : index
    %c0_21 = arith.constant 0 : index
    %21 = vector.load %arg7[%c1, %c0_20, %c0_21] : memref<2x1x128xf32, #tpu.memory_space<vmem>>, vector<1x1x128xf32>
    %22 = vector.shape_cast %21 : vector<1x1x128xf32> to vector<1x128xf32>
    %23 = vector.broadcast %22 : vector<1x128xf32> to vector<16x128xf32>
    %24 = arith.addf %20, %23 : vector<16x128xf32>
    %cst_22 = arith.constant 0.000000e+00 : f32
    %25 = vector.broadcast %cst_22 : f32 to vector<16x128xf32>
    %26 = arith.maximumf %24, %25 : vector<16x128xf32>
    %c0_23 = arith.constant 0 : index
    %c0_24 = arith.constant 0 : index
    %27 = vector.load %arg8[%c0_23, %c0_24] : memref<16x128xf32, #tpu.memory_space<vmem>>, vector<16x128xf32>
    tpu.vector_store %arg8[%c0_23, %c0_24], %26 {strides = array<i32>} : memref<16x128xf32, #tpu.memory_space<vmem>>, vector<16x128xf32>,
    return
  }
  func.func @transform_0(%arg0: i32) -> (i32, i32) {
    %c0_i32 = arith.constant 0 : i32
    %c0_i32_0 = arith.constant 0 : i32
    return %arg0, %c0_i32 : i32, i32
  }
  func.func @transform_1(%arg0: i32) -> (i32, i32) {
    %c0_i32 = arith.constant 0 : i32
    %c0_i32_0 = arith.constant 0 : i32
    return %arg0, %c0_i32 : i32, i32
  }
  func.func @transform_2(%arg0: i32) -> (i32, i32) {
    %c0_i32 = arith.constant 0 : i32
    %c0_i32_0 = arith.constant 0 : i32
    %c0_i32_1 = arith.constant 0 : i32
    return %c0_i32, %c0_i32_0 : i32, i32
  }
  func.func @transform_3(%arg0: i32) -> (i32, i32) {
    %c0_i32 = arith.constant 0 : i32
    %c0_i32_0 = arith.constant 0 : i32
    %c0_i32_1 = arith.constant 0 : i32
    return %c0_i32, %c0_i32_0 : i32, i32
  }
  func.func @transform_4(%arg0: i32) -> (i32, i32, i32) {
    %c0_i32 = arith.constant 0 : i32
    %c0_i32_0 = arith.constant 0 : i32
    %c0_i32_1 = arith.constant 0 : i32
    %c0_i32_2 = arith.constant 0 : i32
    return %c0_i32, %c0_i32_0, %c0_i32_1 : i32, i32, i32
  }
  func.func @transform_5(%arg0: i32) -> (i32, i32, i32) {
    %c0_i32 = arith.constant 0 : i32
    %c0_i32_0 = arith.constant 0 : i32
    %c0_i32_1 = arith.constant 0 : i32
    %c0_i32_2 = arith.constant 0 : i32
    return %c0_i32, %c0_i32_0, %c0_i32_1 : i32, i32, i32
  }
  func.func @transform_6(%arg0: i32) -> (i32, i32, i32) {
    %c0_i32 = arith.constant 0 : i32
    %c0_i32_0 = arith.constant 0 : i32
    %c0_i32_1 = arith.constant 0 : i32
    %c0_i32_2 = arith.constant 0 : i32
    return %c0_i32, %c0_i32_0, %c0_i32_1 : i32, i32, i32
  }
  func.func @transform_7(%arg0: i32) -> (i32, i32) {
    %c0_i32 = arith.constant 0 : i32
    %c0_i32_0 = arith.constant 0 : i32
    return %arg0, %c0_i32 : i32, i32
  }
}

</mosaic_0001>

<llo_original>
// kernel: tpu_custom_call.1
$region0: #{tpu_custom_call.1}
  #allocation0 [shape = 'u32[]', space=smem, size = 0x4, offset = 0x4, fixed_abs, tag = 'smem constant byte address 0x4 - core index']
  #allocation1 [shape = 'u32[144,128]{1,0:T(1,128)}', space=vmem, size = 0x12000, scoped, tag = 'internal scratch']
  %s0 = inlined_call_operand.hbm [shape: bf16[16,128], index: 0, kind: input, shape index: {}]
  %s1 = inlined_call_operand.hbm [shape: bf16[16,128], index: 1, kind: input, shape index: {}]
  %s2 = inlined_call_operand.hbm [shape: bf16[128,128], index: 2, kind: input, shape index: {}]
  %s3 = inlined_call_operand.hbm [shape: bf16[128,128], index: 3, kind: input, shape index: {}]
  %s4 = inlined_call_operand.hbm [shape: bf16[1,128,128], index: 4, kind: input, shape index: {}]
  %s5 = inlined_call_operand.hbm [shape: bf16[1,128,128], index: 5, kind: input, shape index: {}]
  %s6 = inlined_call_operand.vmem [shape: f32[2,1,128], index: 6, kind: input, shape index: {}]
  %s7 = inlined_call_operand.hbm [shape: f32[16,128], index: 7, kind: output, shape index: {}]
  %s8 = sld [smem:[#allocation0]]
  $region62: #{tpu_custom_call.1} parent=0
    _
  %s10 = ssub.s32 1, %s8
  %s11 = scalar_select 0, %s10, %s8
  $region1: #{tpu_custom_call.1} parent=0
    #allocation2 [shape = 'u8[4096]{0}', space=vmem, size = 0x1000, scoped, tag = 'input window, operand 0, single buffered']
    #allocation3 [shape = 's32[1]{0}', space=sflag, size = 0x4, scoped, tag = 'scoped memory for tpu_custom_call.1']
    #allocation4 [shape = 's32[1]{0}', space=sflag, size = 0x4, scoped, tag = 'scoped memory for tpu_custom_call.1']
    #allocation5 [shape = 'u8[4096]{0}', space=vmem, size = 0x1000, scoped, tag = 'input window, operand 1, single buffered']
    #allocation6 [shape = 's32[1]{0}', space=sflag, size = 0x4, scoped, tag = 'scoped memory for tpu_custom_call.1']
    #allocation7 [shape = 'u8[32768]{0}', space=vmem, size = 0x8000, scoped, tag = 'input window, operand 2, single buffered']
    #allocation8 [shape = 'u8[32768]{0}', space=vmem, size = 0x8000, scoped, tag = 'input window, operand 3, single buffered']
    #allocation9 [shape = 's32[1]{0}', space=sflag, size = 0x4, scoped, tag = 'scoped memory for tpu_custom_call.1']
    #allocation10 [shape = 'u8[32768]{0}', space=vmem, size = 0x8000, scoped, tag = 'input window, operand 4, single buffered']
    #allocation11 [shape = 'u8[32768]{0}', space=vmem, size = 0x8000, scoped, tag = 'input window, operand 5, single buffered']
    #allocation12 [shape = 's32[1]{0}', space=sflag, size = 0x4, scoped, tag = 'scoped memory for tpu_custom_call.1']
    #allocation13 [shape = 'u8[8192]{0}', space=vmem, size = 0x2000, scoped, tag = 'output window, operand 0, single buffered']
    %12 = vsyncpa [#allocation3], 0
    %13 = vsyncpa [#allocation6], 0
    %14 = vsyncpa [#allocation9], 0
    %15 = vsyncpa [#allocation12], 0
    %16 = vsyncpa [#allocation4], 0
    // Predicated region
    $region2: #{tpu_custom_call.1} parent=1 // pred_check
      _
    $region3: #{tpu_custom_call.1} parent=1 // pred_check_branch
      %18 = sbr.rel (0) target = $region5
    $region4: #{tpu_custom_call.1} parent=1 // pred_region
      %s20 = ssub.s32 128, 128
      %21 = vsyncadd [#allocation3], %s20
      %s22 = sshll.u32 [#allocation2], 4
      %s23 = int_to_ptr.vmem [resolvable:$true] %s22
      %28 = dma.hbm_to_vmem [thread:$0]  %s0, 128, %s23, [#allocation3], 64, 64, 4
    $region5: #{tpu_custom_call.1} parent=1 // pred_fallthru
      _
    // Predicated region
    $region6: #{tpu_custom_call.1} parent=1 // pred_check
      _
    $region7: #{tpu_custom_call.1} parent=1 // pred_check_branch
      %30 = sbr.rel (0) target = $region9
    $region8: #{tpu_custom_call.1} parent=1 // pred_region
      %s32 = ssub.s32 128, 128
      %33 = vsyncadd [#allocation6], %s32
      %s34 = sshll.u32 [#allocation5], 4
      %s35 = int_to_ptr.vmem [resolvable:$true] %s34
      %40 = dma.hbm_to_vmem [thread:$0]  %s1, 128, %s35, [#allocation6], 64, 64, 4
    $region9: #{tpu_custom_call.1} parent=1 // pred_fallthru
      _
    // Predicated region
    $region10: #{tpu_custom_call.1} parent=1 // pred_check
      _
    $region11: #{tpu_custom_call.1} parent=1 // pred_check_branch
      %42 = sbr.rel (0) target = $region13
    $region12: #{tpu_custom_call.1} parent=1 // pred_region
      %s44 = ssub.s32 1024, 1024
      %45 = vsyncadd [#allocation6], %s44
      %s46 = sshll.u32 [#allocation7], 4
      %s47 = int_to_ptr.vmem [resolvable:$true] %s46
      %52 = dma.hbm_to_vmem [thread:$0]  %s2, 1024, %s47, [#allocation6], 64, 64, 4
    $region13: #{tpu_custom_call.1} parent=1 // pred_fallthru
      _
    // Predicated region
    $region14: #{tpu_custom_call.1} parent=1 // pred_check
      _
    $region15: #{tpu_custom_call.1} parent=1 // pred_check_branch
      %54 = sbr.rel (0) target = $region17
    $region16: #{tpu_custom_call.1} parent=1 // pred_region
      %s56 = ssub.s32 1024, 1024
      %57 = vsyncadd [#allocation9], %s56
      %s58 = sshll.u32 [#allocation8], 4
      %s59 = int_to_ptr.vmem [resolvable:$true] %s58
      %64 = dma.hbm_to_vmem [thread:$0]  %s3, 1024, %s59, [#allocation9], 64, 64, 4
    $region17: #{tpu_custom_call.1} parent=1 // pred_fallthru
      _
    // Predicated region
    $region18: #{tpu_custom_call.1} parent=1 // pred_check
      _
    $region19: #{tpu_custom_call.1} parent=1 // pred_check_branch
      %66 = sbr.rel (0) target = $region21
    $region20: #{tpu_custom_call.1} parent=1 // pred_region
      %s68 = ssub.s32 1024, 1024
      %69 = vsyncadd [#allocation9], %s68
      %s70 = sshll.u32 [#allocation10], 4
      %s71 = int_to_ptr.vmem [resolvable:$true] %s70
      %76 = dma.hbm_to_vmem [thread:$0]  %s4, 1024, %s71, [#allocation9], 64, 64, 4
    $region21: #{tpu_custom_call.1} parent=1 // pred_fallthru
      _
    // Predicated region
    $region22: #{tpu_custom_call.1} parent=1 // pred_check
      _
    $region23: #{tpu_custom_call.1} parent=1 // pred_check_branch
      %78 = sbr.rel (0) target = $region25
    $region24: #{tpu_custom_call.1} parent=1 // pred_region
      %s80 = ssub.s32 1024, 1024
      %81 = vsyncadd [#allocation12], %s80
      %s82 = sshll.u32 [#allocation11], 4
      %s83 = int_to_ptr.vmem [resolvable:$true] %s82
      %88 = dma.hbm_to_vmem [thread:$0]  %s5, 1024, %s83, [#allocation12], 64, 64, 4
    $region25: #{tpu_custom_call.1} parent=1 // pred_fallthru
      _
    // Predicated region
    $region26: #{tpu_custom_call.1} parent=1 // pred_check
      _
    $region27: #{tpu_custom_call.1} parent=1 // pred_check_branch
      %90 = sbr.rel (0) target = $region29
    $region28: #{tpu_custom_call.1} parent=1 // pred_region
      _
    $region29: #{tpu_custom_call.1} parent=1 // pred_fallthru
      _
    // Predicated region
    $region30: #{tpu_custom_call.1} parent=1 // pred_check
      _
    $region31: #{tpu_custom_call.1} parent=1 // pred_check_branch
      %92 = sbr.rel (0) target = $region33
    $region32: #{tpu_custom_call.1} parent=1 // pred_region
      %93 = dma.done [#allocation3], 128
    $region33: #{tpu_custom_call.1} parent=1 // pred_fallthru
      _
    // Predicated region
    $region34: #{tpu_custom_call.1} parent=1 // pred_check
      _
    $region35: #{tpu_custom_call.1} parent=1 // pred_check_branch
      %95 = sbr.rel (0) target = $region37
    $region36: #{tpu_custom_call.1} parent=1 // pred_region
      %96 = dma.done [#allocation6], 128
    $region37: #{tpu_custom_call.1} parent=1 // pred_fallthru
      _
    // Predicated region
    $region38: #{tpu_custom_call.1} parent=1 // pred_check
      _
    $region39: #{tpu_custom_call.1} parent=1 // pred_check_branch
      %98 = sbr.rel (0) target = $region41
    $region40: #{tpu_custom_call.1} parent=1 // pred_region
      %99 = dma.done [#allocation6], 1024
    $region41: #{tpu_custom_call.1} parent=1 // pred_fallthru
      _
    // Predicated region
    $region42: #{tpu_custom_call.1} parent=1 // pred_check
      _
    $region43: #{tpu_custom_call.1} parent=1 // pred_check_branch
      %101 = sbr.rel (0) target = $region45
    $region44: #{tpu_custom_call.1} parent=1 // pred_region
      %102 = dma.done [#allocation9], 1024
    $region45: #{tpu_custom_call.1} parent=1 // pred_fallthru
      _
    // Predicated region
    $region46: #{tpu_custom_call.1} parent=1 // pred_check
      _
    $region47: #{tpu_custom_call.1} parent=1 // pred_check_branch
      %104 = sbr.rel (0) target = $region49
    $region48: #{tpu_custom_call.1} parent=1 // pred_region
      %105 = dma.done [#allocation9], 1024
    $region49: #{tpu_custom_call.1} parent=1 // pred_fallthru
      _
    // Predicated region
    $region50: #{tpu_custom_call.1} parent=1 // pred_check
      _
    $region51: #{tpu_custom_call.1} parent=1 // pred_check_branch
      %107 = sbr.rel (0) target = $region53
    $region52: #{tpu_custom_call.1} parent=1 // pred_region
      %108 = dma.done [#allocation12], 1024
    $region53: #{tpu_custom_call.1} parent=1 // pred_fallthru
      _
    %v110 = vld [vmem:[#allocation5] sm:$0xf]
    %v111 = vld [vmem:[#allocation5 + $0x4] sm:$0xf]
    %v112 = vld [vmem:[#allocation2] sm:$0xf]
    %v113 = vld [vmem:[#allocation2 + $0x4] sm:$0xf]
    %v114 = vld [vmem:[#allocation7] sm:$0xf]
    %v115 = vld [vmem:[#allocation7 + $0x4] sm:$0xf]
    %v116 = vld [vmem:[#allocation7 + $0x8] sm:$0xf]
    %v117 = vld [vmem:[#allocation7 + $0xc] sm:$0xf]
    %v118 = vld [vmem:[#allocation7 + $0x10] sm:$0xf]
    %v119 = vld [vmem:[#allocation7 + $0x14] sm:$0xf]
    %v120 = vld [vmem:[#allocation7 + $0x18] sm:$0xf]
    %v121 = vld [vmem:[#allocation7 + $0x1c] sm:$0xf]
    %v122 = vld [vmem:[#allocation7 + $0x20] sm:$0xf]
    %v123 = vld [vmem:[#allocation7 + $0x24] sm:$0xf]
    %v124 = vld [vmem:[#allocation7 + $0x28] sm:$0xf]
    %v125 = vld [vmem:[#allocation7 + $0x2c] sm:$0xf]
    %v126 = vld [vmem:[#allocation7 + $0x30] sm:$0xf]
    %v127 = vld [vmem:[#allocation7 + $0x34] sm:$0xf]
    %v128 = vld [vmem:[#allocation7 + $0x38] sm:$0xf]
    %v129 = vld [vmem:[#allocation7 + $0x3c] sm:$0xf]
    %v130 = vld [vmem:[#allocation8] sm:$0xf]
    %v131 = vld [vmem:[#allocation8 + $0x4] sm:$0xf]
    %v132 = vld [vmem:[#allocation8 + $0x8] sm:$0xf]
    %v133 = vld [vmem:[#allocation8 + $0xc] sm:$0xf]
    %v134 = vld [vmem:[#allocation8 + $0x10] sm:$0xf]
    %v135 = vld [vmem:[#allocation8 + $0x14] sm:$0xf]
    %v136 = vld [vmem:[#allocation8 + $0x18] sm:$0xf]
    %v137 = vld [vmem:[#allocation8 + $0x1c] sm:$0xf]
    %v138 = vld [vmem:[#allocation8 + $0x20] sm:$0xf]
    %v139 = vld [vmem:[#allocation8 + $0x24] sm:$0xf]
    %v140 = vld [vmem:[#allocation8 + $0x28] sm:$0xf]
    %v141 = vld [vmem:[#allocation8 + $0x2c] sm:$0xf]
    %v142 = vld [vmem:[#allocation8 + $0x30] sm:$0xf]
    %v143 = vld [vmem:[#allocation8 + $0x34] sm:$0xf]
    %v144 = vld [vmem:[#allocation8 + $0x38] sm:$0xf]
    %v145 = vld [vmem:[#allocation8 + $0x3c] sm:$0xf]
    %v148 = vunpack.c.l.b16 %v110
    %v149 = vunpack.c.l.b16 %v111
    %v150 = vpack.c.b16 %v149, %v148
    %v168 = vunpack.c.l.b16 %v130
    %v169 = vunpack.c.l.b16 %v131
    %v170 = vunpack.c.l.b16 %v132
    %v171 = vunpack.c.l.b16 %v133
    %v172 = vunpack.c.l.b16 %v134
    %v173 = vunpack.c.l.b16 %v135
    %v174 = vunpack.c.l.b16 %v136
    %v175 = vunpack.c.l.b16 %v137
    %v176 = vunpack.c.l.b16 %v138
    %v177 = vunpack.c.l.b16 %v139
    %v178 = vunpack.c.l.b16 %v140
    %v179 = vunpack.c.l.b16 %v141
    %v180 = vunpack.c.l.b16 %v142
    %v181 = vunpack.c.l.b16 %v143
    %v182 = vunpack.c.l.b16 %v144
    %v183 = vunpack.c.l.b16 %v145
    %v184 = vpack.c.b16 %v169, %v168
    %v185 = vpack.c.b16 %v171, %v170
    %v186 = vpack.c.b16 %v173, %v172
    %v187 = vpack.c.b16 %v175, %v174
    %v188 = vpack.c.b16 %v177, %v176
    %v189 = vpack.c.b16 %v179, %v178
    %v190 = vpack.c.b16 %v181, %v180
    %v191 = vpack.c.b16 %v183, %v182
    %200 = vmatprep.subr.bf16.mxu0 0
    %201 = vmatpush1.bf16.msra.mxu0 %v184
    %202 = vmatprep.subr.bf16.mxu0 0
    %203 = vmatpush1.bf16.msra.mxu0 %v185
    %204 = vmatprep.subr.bf16.mxu0 0
    %205 = vmatpush1.bf16.msra.mxu0 %v186
    %206 = vmatprep.subr.bf16.mxu0 0
    %207 = vmatpush1.bf16.msra.mxu0 %v187
    %208 = vmatprep.subr.bf16.mxu0 0
    %209 = vmatpush1.bf16.msra.mxu0 %v188
    %210 = vmatprep.subr.bf16.mxu0 0
    %211 = vmatpush1.bf16.msra.mxu0 %v189
    %212 = vmatprep.subr.bf16.mxu0 0
    %213 = vmatpush1.bf16.msra.mxu0 %v190
    %214 = vmatprep.subr.bf16.mxu0 0
    %215 = vmatpush1.bf16.msra.mxu0 %v191
    %216 = vmatprep.subr.bf16.mxu0 0
    %217 = vmatpush1.bf16.msra.mxu0 0
    %218 = vmatprep.subr.bf16.mxu0 0
    %219 = vmatpush1.bf16.msra.mxu0 0
    %220 = vmatprep.subr.bf16.mxu0 0
    %221 = vmatpush1.bf16.msra.mxu0 0
    %222 = vmatprep.subr.bf16.mxu0 0
    %223 = vmatpush1.bf16.msra.mxu0 0
    %224 = vmatprep.subr.bf16.mxu0 0
    %225 = vmatpush1.bf16.msra.mxu0 0
    %226 = vmatprep.subr.bf16.mxu0 0
    %227 = vmatpush1.bf16.msra.mxu0 0
    %228 = vmatprep.subr.bf16.mxu0 0
    %229 = vmatpush1.bf16.msra.mxu0 0
    %230 = vmatprep.subr.bf16.mxu0 0
    %231 = vmatpush1.bf16.msra.mxu0 0
    %232 = vmatprep.mubr.bf16.mxu0 0
    %233 = vmatmul.mubr.bf16.gmra.mrb[0].mxu0 %v150
    %v234 = vpop.f32.mrb[0].mxu0
    %v235 = vadd.f32 0.0, %v234
    %v236 = vpop.f32.mrb[0].mxu0
    %v237 = vpop.f32.mrb[0].mxu0
    %v238 = vadd.f32 0.0, %v237
    %v239 = vpop.f32.mrb[0].mxu0
    %240 = vdwg.mxu0
    %v243 = vunpack.c.l.b16 %v112
    %v244 = vunpack.c.l.b16 %v113
    %v245 = vpack.c.b16 %v244, %v243
    %v263 = vunpack.c.l.b16 %v114
    %v264 = vunpack.c.l.b16 %v115
    %v265 = vunpack.c.l.b16 %v116
    %v266 = vunpack.c.l.b16 %v117
    %v267 = vunpack.c.l.b16 %v118
    %v268 = vunpack.c.l.b16 %v119
    %v269 = vunpack.c.l.b16 %v120
    %v270 = vunpack.c.l.b16 %v121
    %v271 = vunpack.c.l.b16 %v122
    %v272 = vunpack.c.l.b16 %v123
    %v273 = vunpack.c.l.b16 %v124
    %v274 = vunpack.c.l.b16 %v125
    %v275 = vunpack.c.l.b16 %v126
    %v276 = vunpack.c.l.b16 %v127
    %v277 = vunpack.c.l.b16 %v128
    %v278 = vunpack.c.l.b16 %v129
    %v279 = vpack.c.b16 %v264, %v263
    %v280 = vpack.c.b16 %v266, %v265
    %v281 = vpack.c.b16 %v268, %v267
    %v282 = vpack.c.b16 %v270, %v269
    %v283 = vpack.c.b16 %v272, %v271
    %v284 = vpack.c.b16 %v274, %v273
    %v285 = vpack.c.b16 %v276, %v275
    %v286 = vpack.c.b16 %v278, %v277
    %295 = vmatprep.subr.bf16.mxu0 0
    %296 = vmatpush1.bf16.msra.mxu0 %v279
    %297 = vmatprep.subr.bf16.mxu0 0
    %298 = vmatpush1.bf16.msra.mxu0 %v280
    %299 = vmatprep.subr.bf16.mxu0 0
    %300 = vmatpush1.bf16.msra.mxu0 %v281
    %301 = vmatprep.subr.bf16.mxu0 0
    %302 = vmatpush1.bf16.msra.mxu0 %v282
    %303 = vmatprep.subr.bf16.mxu0 0
    %304 = vmatpush1.bf16.msra.mxu0 %v283
    %305 = vmatprep.subr.bf16.mxu0 0
    %306 = vmatpush1.bf16.msra.mxu0 %v284
    %307 = vmatprep.subr.bf16.mxu0 0
    %308 = vmatpush1.bf16.msra.mxu0 %v285
    %309 = vmatprep.subr.bf16.mxu0 0
    %310 = vmatpush1.bf16.msra.mxu0 %v286
    %311 = vmatprep.subr.bf16.mxu0 0
    %312 = vmatpush1.bf16.msra.mxu0 0
    %313 = vmatprep.subr.bf16.mxu0 0
    %314 = vmatpush1.bf16.msra.mxu0 0
    %315 = vmatprep.subr.bf16.mxu0 0
    %316 = vmatpush1.bf16.msra.mxu0 0
    %317 = vmatprep.subr.bf16.mxu0 0
    %318 = vmatpush1.bf16.msra.mxu0 0
    %319 = vmatprep.subr.bf16.mxu0 0
    %320 = vmatpush1.bf16.msra.mxu0 0
    %321 = vmatprep.subr.bf16.mxu0 0
    %322 = vmatpush1.bf16.msra.mxu0 0
    %323 = vmatprep.subr.bf16.mxu0 0
    %324 = vmatpush1.bf16.msra.mxu0 0
    %325 = vmatprep.subr.bf16.mxu0 0
    %326 = vmatpush1.bf16.msra.mxu0 0
    %327 = vmatprep.mubr.bf16.mxu0 0
    %328 = vmatmul.mubr.bf16.gmra.mrb[0].mxu0 %v245
    %v329 = vpop.f32.mrb[0].mxu0
    %v330 = vadd.f32 %v235, %v329
    %v331 = vpop.f32.mrb[0].mxu0
    %v332 = vpop.f32.mrb[0].mxu0
    %v333 = vadd.f32 %v238, %v332
    %v334 = vpop.f32.mrb[0].mxu0
    %335 = vdwg.mxu0
    %v336 = vld [vmem:[%s6] sm:$0x1]
    %v338 = vlaneseq
    %v339 = vshrl.u32 %v338, 7
    %v340 = vsub.s32 0, %v339
    %v341 = vrot.slane %v336, %v340
    %v343 = vadd.f32 %v330, %v341
    %v344 = vadd.f32 %v333, %v341
    %v345 = vmax.f32 %v343, 0.0
    %v346 = vmax.f32 %v344, 0.0
    %v347 = vpack.c.bf16 %v346, %v345
    %v348 = vld [vmem:[#allocation10] sm:$0xf]
    %v349 = vld [vmem:[#allocation10 + $0x4] sm:$0xf]
    %v350 = vld [vmem:[#allocation10 + $0x8] sm:$0xf]
    %v351 = vld [vmem:[#allocation10 + $0xc] sm:$0xf]
    %v352 = vld [vmem:[#allocation10 + $0x10] sm:$0xf]
    %v353 = vld [vmem:[#allocation10 + $0x14] sm:$0xf]
    %v354 = vld [vmem:[#allocation10 + $0x18] sm:$0xf]
    %v355 = vld [vmem:[#allocation10 + $0x1c] sm:$0xf]
    %v356 = vld [vmem:[#allocation10 + $0x20] sm:$0xf]
    %v357 = vld [vmem:[#allocation10 + $0x24] sm:$0xf]
    %v358 = vld [vmem:[#allocation10 + $0x28] sm:$0xf]
    %v359 = vld [vmem:[#allocation10 + $0x2c] sm:$0xf]
    %v360 = vld [vmem:[#allocation10 + $0x30] sm:$0xf]
    %v361 = vld [vmem:[#allocation10 + $0x34] sm:$0xf]
    %v362 = vld [vmem:[#allocation10 + $0x38] sm:$0xf]
    %v363 = vld [vmem:[#allocation10 + $0x3c] sm:$0xf]
    %v364 = vld [vmem:[#allocation11] sm:$0xf]
    %v365 = vld [vmem:[#allocation11 + $0x4] sm:$0xf]
    %v366 = vld [vmem:[#allocation11 + $0x8] sm:$0xf]
    %v367 = vld [vmem:[#allocation11 + $0xc] sm:$0xf]
    %v368 = vld [vmem:[#allocation11 + $0x10] sm:$0xf]
    %v369 = vld [vmem:[#allocation11 + $0x14] sm:$0xf]
    %v370 = vld [vmem:[#allocation11 + $0x18] sm:$0xf]
    %v371 = vld [vmem:[#allocation11 + $0x1c] sm:$0xf]
    %v372 = vld [vmem:[#allocation11 + $0x20] sm:$0xf]
    %v373 = vld [vmem:[#allocation11 + $0x24] sm:$0xf]
    %v374 = vld [vmem:[#allocation11 + $0x28] sm:$0xf]
    %v375 = vld [vmem:[#allocation11 + $0x2c] sm:$0xf]
    %v376 = vld [vmem:[#allocation11 + $0x30] sm:$0xf]
    %v377 = vld [vmem:[#allocation11 + $0x34] sm:$0xf]
    %v378 = vld [vmem:[#allocation11 + $0x38] sm:$0xf]
    %v379 = vld [vmem:[#allocation11 + $0x3c] sm:$0xf]
    %v396 = vunpack.c.l.b16 %v364
    %v397 = vunpack.c.l.b16 %v365
    %v398 = vunpack.c.l.b16 %v366
    %v399 = vunpack.c.l.b16 %v367
    %v400 = vunpack.c.l.b16 %v368
    %v401 = vunpack.c.l.b16 %v369
    %v402 = vunpack.c.l.b16 %v370
    %v403 = vunpack.c.l.b16 %v371
    %v404 = vunpack.c.l.b16 %v372
    %v405 = vunpack.c.l.b16 %v373
    %v406 = vunpack.c.l.b16 %v374
    %v407 = vunpack.c.l.b16 %v375
    %v408 = vunpack.c.l.b16 %v376
    %v409 = vunpack.c.l.b16 %v377
    %v410 = vunpack.c.l.b16 %v378
    %v411 = vunpack.c.l.b16 %v379
    %v412 = vpack.c.b16 %v397, %v396
    %v413 = vpack.c.b16 %v399, %v398
    %v414 = vpack.c.b16 %v401, %v400
    %v415 = vpack.c.b16 %v403, %v402
    %v416 = vpack.c.b16 %v405, %v404
    %v417 = vpack.c.b16 %v407, %v406
    %v418 = vpack.c.b16 %v409, %v408
    %v419 = vpack.c.b16 %v411, %v410
    %428 = vmatprep.subr.bf16.mxu0 0
    %429 = vmatpush1.bf16.msra.mxu0 %v412
    %430 = vmatprep.subr.bf16.mxu0 0
    %431 = vmatpush1.bf16.msra.mxu0 %v413
    %432 = vmatprep.subr.bf16.mxu0 0
    %433 = vmatpush1.bf16.msra.mxu0 %v414
    %434 = vmatprep.subr.bf16.mxu0 0
    %435 = vmatpush1.bf16.msra.mxu0 %v415
    %436 = vmatprep.subr.bf16.mxu0 0
    %437 = vmatpush1.bf16.msra.mxu0 %v416
    %438 = vmatprep.subr.bf16.mxu0 0
    %439 = vmatpush1.bf16.msra.mxu0 %v417
    %440 = vmatprep.subr.bf16.mxu0 0
    %441 = vmatpush1.bf16.msra.mxu0 %v418
    %442 = vmatprep.subr.bf16.mxu0 0
    %443 = vmatpush1.bf16.msra.mxu0 %v419
    %444 = vmatprep.subr.bf16.mxu0 0
    %445 = vmatpush1.bf16.msra.mxu0 0
    %446 = vmatprep.subr.bf16.mxu0 0
    %447 = vmatpush1.bf16.msra.mxu0 0
    %448 = vmatprep.subr.bf16.mxu0 0
    %449 = vmatpush1.bf16.msra.mxu0 0
    %450 = vmatprep.subr.bf16.mxu0 0
    %451 = vmatpush1.bf16.msra.mxu0 0
    %452 = vmatprep.subr.bf16.mxu0 0
    %453 = vmatpush1.bf16.msra.mxu0 0
    %454 = vmatprep.subr.bf16.mxu0 0
    %455 = vmatpush1.bf16.msra.mxu0 0
    %456 = vmatprep.subr.bf16.mxu0 0
    %457 = vmatpush1.bf16.msra.mxu0 0
    %458 = vmatprep.subr.bf16.mxu0 0
    %459 = vmatpush1.bf16.msra.mxu0 0
    %460 = vmatprep.mubr.bf16.mxu0 0
    %461 = vmatmul.mubr.bf16.gmra.mrb[0].mxu0 %v150
    %v462 = vpop.f32.mrb[0].mxu0
    %v463 = vadd.f32 0.0, %v462
    %v464 = vpop.f32.mrb[0].mxu0
    %v465 = vpop.f32.mrb[0].mxu0
    %v466 = vadd.f32 0.0, %v465
    %v467 = vpop.f32.mrb[0].mxu0
    %468 = vdwg.mxu0
    %v485 = vunpack.c.l.b16 %v348
    %v486 = vunpack.c.l.b16 %v349
    %v487 = vunpack.c.l.b16 %v350
    %v488 = vunpack.c.l.b16 %v351
    %v489 = vunpack.c.l.b16 %v352
    %v490 = vunpack.c.l.b16 %v353
    %v491 = vunpack.c.l.b16 %v354
    %v492 = vunpack.c.l.b16 %v355
    %v493 = vunpack.c.l.b16 %v356
    %v494 = vunpack.c.l.b16 %v357
    %v495 = vunpack.c.l.b16 %v358
    %v496 = vunpack.c.l.b16 %v359
    %v497 = vunpack.c.l.b16 %v360
    %v498 = vunpack.c.l.b16 %v361
    %v499 = vunpack.c.l.b16 %v362
    %v500 = vunpack.c.l.b16 %v363
    %v501 = vpack.c.b16 %v486, %v485
    %v502 = vpack.c.b16 %v488, %v487
    %v503 = vpack.c.b16 %v490, %v489
    %v504 = vpack.c.b16 %v492, %v491
    %v505 = vpack.c.b16 %v494, %v493
    %v506 = vpack.c.b16 %v496, %v495
    %v507 = vpack.c.b16 %v498, %v497
    %v508 = vpack.c.b16 %v500, %v499
    %517 = vmatprep.subr.bf16.mxu0 0
    %518 = vmatpush1.bf16.msra.mxu0 %v501
    %519 = vmatprep.subr.bf16.mxu0 0
    %520 = vmatpush1.bf16.msra.mxu0 %v502
    %521 = vmatprep.subr.bf16.mxu0 0
    %522 = vmatpush1.bf16.msra.mxu0 %v503
    %523 = vmatprep.subr.bf16.mxu0 0
    %524 = vmatpush1.bf16.msra.mxu0 %v504
    %525 = vmatprep.subr.bf16.mxu0 0
    %526 = vmatpush1.bf16.msra.mxu0 %v505
    %527 = vmatprep.subr.bf16.mxu0 0
    %528 = vmatpush1.bf16.msra.mxu0 %v506
    %529 = vmatprep.subr.bf16.mxu0 0
    %530 = vmatpush1.bf16.msra.mxu0 %v507
    %531 = vmatprep.subr.bf16.mxu0 0
    %532 = vmatpush1.bf16.msra.mxu0 %v508
    %533 = vmatprep.subr.bf16.mxu0 0
    %534 = vmatpush1.bf16.msra.mxu0 0
    %535 = vmatprep.subr.bf16.mxu0 0
    %536 = vmatpush1.bf16.msra.mxu0 0
    %537 = vmatprep.subr.bf16.mxu0 0
    %538 = vmatpush1.bf16.msra.mxu0 0
    %539 = vmatprep.subr.bf16.mxu0 0
    %540 = vmatpush1.bf16.msra.mxu0 0
    %541 = vmatprep.subr.bf16.mxu0 0
    %542 = vmatpush1.bf16.msra.mxu0 0
    %543 = vmatprep.subr.bf16.mxu0 0
    %544 = vmatpush1.bf16.msra.mxu0 0
    %545 = vmatprep.subr.bf16.mxu0 0
    %546 = vmatpush1.bf16.msra.mxu0 0
    %547 = vmatprep.subr.bf16.mxu0 0
    %548 = vmatpush1.bf16.msra.mxu0 0
    %549 = vmatprep.mubr.bf16.mxu0 0
    %550 = vmatmul.mubr.bf16.gmra.mrb[0].mxu0 %v347
    %v551 = vpop.f32.mrb[0].mxu0
    %v552 = vadd.f32 %v463, %v551
    %v553 = vpop.f32.mrb[0].mxu0
    %v554 = vpop.f32.mrb[0].mxu0
    %v555 = vadd.f32 %v466, %v554
    %v556 = vpop.f32.mrb[0].mxu0
    %557 = vdwg.mxu0
    %s558 = scalar_lea.vmem %s6, 1
    %v559 = vld [vmem:[%s558] sm:$0x1]
    %v561 = vlaneseq
    %v562 = vshrl.u32 %v561, 7
    %v563 = vsub.s32 0, %v562
    %v564 = vrot.slane %v559, %v563
    %v566 = vadd.f32 %v552, %v564
    %v567 = vadd.f32 %v555, %v564
    %v568 = vmax.f32 %v566, 0.0
    %v569 = vmax.f32 %v567, 0.0
    %570 = vst [vmem:[#allocation13] sm:$0xff] %v568
    %571 = vst [vmem:[#allocation13 + $0x8] sm:$0xff] %v569
    // Predicated region
    $region54: #{tpu_custom_call.1} parent=1 // pred_check
      _
    $region55: #{tpu_custom_call.1} parent=1 // pred_check_branch
      %573 = sbr.rel (0) target = $region57
    $region56: #{tpu_custom_call.1} parent=1 // pred_region
      %s575 = ssub.s32 256, 256
      %576 = vsyncadd [#allocation4], %s575
      %s577 = sshll.u32 [#allocation13], 4
      %s578 = int_to_ptr.vmem [resolvable:$true] %s577
      %583 = dma.vmem_to_hbm [thread:$0]  %s578, 256, %s7, [#allocation4], 128, 128, 8
    $region57: #{tpu_custom_call.1} parent=1 // pred_fallthru
      _
    // Predicated region
    $region58: #{tpu_custom_call.1} parent=1 // pred_check
      _
    $region59: #{tpu_custom_call.1} parent=1 // pred_check_branch
      %585 = sbr.rel (0) target = $region61
    $region60: #{tpu_custom_call.1} parent=1 // pred_region
      %586 = dma.done [#allocation4], 256
    $region61: #{tpu_custom_call.1} parent=1 // pred_fallthru
      _
    %587 = vsyncpa [#allocation3], 1
    %588 = vsyncpa [#allocation6], 1
    %589 = vsyncpa [#allocation9], 1
    %590 = vsyncpa [#allocation12], 1
    %591 = vsyncpa [#allocation4], 1

</llo_original>
